<compile_context>
chip_gen: v7x
topology: tpu7x:2x2x1
jax: 0.10.0
libtpu: 0.0.40
codegen_flags: <defaults>
</compile_context>

<pallas_src>
import functools
import math

import numpy as np
import jax
import jax.numpy as jnp
from jax.experimental import pallas as pl
from jax.experimental.pallas import tpu as pltpu


# ----------------------------------------------------------------------------
# Host-side glue: build dense bicubic resize matrices (matches core.imresize).
# ----------------------------------------------------------------------------
def _cubic_contribution(x, a=-0.5):
    ax = np.abs(x)
    ax2 = ax * ax
    ax3 = ax2 * ax
    c01 = (a + 2.0) * ax3 - (a + 3.0) * ax2 + 1.0
    c12 = a * ax3 - 5.0 * a * ax2 + 8.0 * a * ax - 4.0 * a
    return np.where(ax <= 1.0, c01, np.where(ax <= 2.0, c12, 0.0))


def _bicubic_resize_matrix(in_size, out_size, scale, antialiasing=True):
    """Dense (out_size, in_size) matrix reproducing bicubic_pytorch resize_1d."""
    kernel_size = 4
    if antialiasing and scale < 1.0:
        antialiasing_factor = scale
        kernel_size = math.ceil(kernel_size / scale)
    else:
        antialiasing_factor = 1.0
    kernel_size += 2  # margin on both sides, as in core.imresize

    pos = np.arange(out_size, dtype=np.float64)
    pos = (pos + 0.5) / scale - 0.5
    base = np.floor(pos) - (kernel_size // 2) + 1
    dist = pos - base

    k = np.arange(kernel_size, dtype=np.float64)[:, None]      # (K, 1)
    rel = (dist[None, :] - k) * antialiasing_factor             # (K, out)
    w = _cubic_contribution(rel)
    w = w / np.sum(w, axis=0, keepdims=True)

    mat = np.zeros((out_size, in_size), dtype=np.float64)
    base_i = base.astype(np.int64)
    for o in range(out_size):
        for kk in range(kernel_size):
            j = int(base_i[o]) + kk
            if j < 0:                       # symmetric ("reflect") padding
                j = -j - 1
            elif j >= in_size:
                j = 2 * in_size - 1 - j
            # Safety clamp: for extreme downscales of tiny images a single
            # reflection can still land out of range; clamp instead of raising.
            j = min(max(j, 0), in_size - 1)
            mat[o, j] += w[kk, o]
    return mat.astype(np.float32)


# ----------------------------------------------------------------------------
# Pallas kernel: per chunk of B slices, resized = Wh @ X_b @ Ww^T via two
# single 2-D MXU matmuls; the chunk's partial sum of |resized - Y_b| goes into
# its own lane-dense (1, 1, 128) output block.
# ----------------------------------------------------------------------------
def _bicubic_l1_kernel(x_ref, y_ref, wwt_ref, wht_ref, out_ref, *, compute_dtype):
    # x_ref:   (B, H_in,  W_in)   native input dtype
    # y_ref:   (B, H_out, W_out)  native input dtype
    # wwt_ref: (W_in,  W_out)     compute dtype (Ww^T, stationary across steps)
    # wht_ref: (H_in,  H_out)     compute dtype (Wh^T, stationary across steps)
    # out_ref: (1, 1, 128) f32    this chunk's partial sum, splatted across lanes
    b, h_in, w_in = x_ref.shape
    w_out = wwt_ref.shape[1]
    h_out = wht_ref.shape[1]

    xm = x_ref[...].astype(compute_dtype)                          # (B, H_in, W_in)

    # W-resize: ONE 2-D MXU matmul, M = B*H_in, K = W_in, N = W_out.
    # (Collapsing leading dims keeps the lane dim unchanged -> free relayout.)
    t = jnp.dot(xm.reshape(b * h_in, w_in), wwt_ref[...],
                preferred_element_type=jnp.float32)                # (B*H_in, W_out) f32

    # H-resize: ONE 2-D MXU matmul, M = B*W_out, K = H_in, N = H_out.
    # A minor-dims transpose puts H_in on the contracted (lane) edge; no
    # broadcast of Wh and no per-slice batched matmuls.
    t = jnp.transpose(t.reshape(b, h_in, w_out), (0, 2, 1))        # (B, W_out, H_in) f32
    res = jnp.dot(t.reshape(b * w_out, h_in).astype(compute_dtype),
                  wht_ref[...],
                  preferred_element_type=jnp.float32)              # (B*W_out, H_out) f32
    res = jnp.transpose(res.reshape(b, w_out, h_out), (0, 2, 1))   # (B, H_out, W_out)

    diff = jnp.abs(res - y_ref[...].astype(jnp.float32))
    s = jnp.sum(diff, keepdims=True)                               # (1, 1, 1)
    out_ref[...] = jnp.broadcast_to(s, (1, 1, 128))                # lane-dense store


def bicubic_l1_loss(x, y, *, max_batch=512):
    """Equivalent of Bicubic.forward(x, y): resize the wider input to the
    narrower one's scale with an antialiased cubic kernel, then mean abs error."""
    # Same swap rule as the PyTorch module (based on width of the last dim).
    if x.shape[-1] <= y.shape[-1]:
        x, y = y, x

    n, c, h_in, w_in = x.shape
    scale = y.shape[-1] / x.shape[-1]
    h_out = math.ceil(h_in * scale)
    w_out = math.ceil(w_in * scale)
    assert (h_out, w_out) == tuple(y.shape[-2:]), "resized x must match y spatially for L1"
    assert (n, c) == tuple(y.shape[:2])

    # bf16 fast path: feed the MXU at native bf16 rate; f32 accumulation below.
    compute_dtype = jnp.bfloat16 if x.dtype == jnp.bfloat16 else jnp.float32
    wwt = jnp.asarray(_bicubic_resize_matrix(w_in, w_out, scale).T, dtype=compute_dtype)  # (W_in, W_out)
    wht = jnp.asarray(_bicubic_resize_matrix(h_in, h_out, scale).T, dtype=compute_dtype)  # (H_in, H_out)

    nc = n * c
    # Keep native dtype over HBM (no wrapper-side astype/transpose pass).
    xr = x.reshape(nc, h_in, w_in)
    yr = y.reshape(nc, h_out, w_out)

    # ---- per-step VMEM budget, derived from the chip ------------------------
    try:
        vmem_cap = int(pltpu.get_tpu_info().vmem_capacity_bytes)
    except Exception:
        vmem_cap = 64 << 20                    # v7x-sized conservative fallback
    budget = (vmem_cap * 3) // 8               # ~48 MiB on 128 MiB parts, ~24 MiB on v7x
    vmem_limit = (vmem_cap * 3) // 4           # explicit limit > scoped defaults

    x_item = jnp.dtype(x.dtype).itemsize
    y_item = jnp.dtype(y.dtype).itemsize
    c_item = jnp.dtype(compute_dtype).itemsize

    # Stationary resize matrices still get double-buffered by the pipeline:
    # count them instead of relying on pl.Buffered(1) support.
    weight_bytes = 2 * c_item * (w_in * w_out + h_in * h_out)
    # Per-slice footprint: double-buffered input blocks + live intermediates
    # (leading-dim reshapes are free and not counted).
    per_slice = (2 * x_item * h_in * w_in                      # x block (x2 buffers)
                 + 2 * y_item * h_out * w_out                  # y block (x2 buffers)
                 + c_item * h_in * w_in                        # in-kernel cast of x
                 + 4 * h_in * w_out * 2                        # dot1 out + minor transpose
                 + c_item * w_out * h_in                       # cast feeding dot2
                 + 4 * h_out * w_out * 4)                      # dot2 out, transpose, y_f32, diff
    # TODO(synk): add spatial (W/H) tiling with an accumulator for single slices whose
    # intermediates exceed the per-step budget (very large images on v7x's 64 MiB VMEM).
    batch = int(max(1, min(max_batch, (budget - weight_bytes) // max(per_slice, 1))))
    # Keep >= 2 grid steps when possible so the "parallel" axis can shard across
    # both TensorCores on v7x (near-free elsewhere: ~0.35 us per extra step).
    batch = int(min(batch, max(1, -(-nc // 2))))
    num_chunks = -(-nc // batch)                               # cdiv
    nc_pad = num_chunks * batch
    if nc_pad != nc:
        # Zero-pad: padded slices contribute |0 - 0| = 0 to their chunk's sum.
        pad = nc_pad - nc
        xr = jnp.concatenate([xr, jnp.zeros((pad, h_in, w_in), xr.dtype)], axis=0)
        yr = jnp.concatenate([yr, jnp.zeros((pad, h_out, w_out), yr.dtype)], axis=0)

    flops = 2 * nc_pad * h_in * w_out * (w_in + h_out)
    bytes_accessed = (nc_pad * (x_item * h_in * w_in + y_item * h_out * w_out)
                      + c_item * (w_in * w_out + h_in * h_out)
                      + num_chunks * 128 * 4)
    cost = pl.CostEstimate(flops=int(flops), transcendentals=0,
                           bytes_accessed=int(bytes_accessed))

    partials = pl.pallas_call(
        functools.partial(_bicubic_l1_kernel, compute_dtype=compute_dtype),
        out_shape=jax.ShapeDtypeStruct((num_chunks, 1, 128), jnp.float32),
        grid_spec=pltpu.PrefetchScalarGridSpec(
            num_scalar_prefetch=0,
            grid=(num_chunks,),
            in_specs=[
                pl.BlockSpec((batch, h_in, w_in), lambda i: (i, 0, 0)),
                pl.BlockSpec((batch, h_out, w_out), lambda i: (i, 0, 0)),
                pl.BlockSpec((w_in, w_out), lambda i: (0, 0)),   # weights stay resident
                pl.BlockSpec((h_in, h_out), lambda i: (0, 0)),
            ],
            out_specs=pl.BlockSpec((1, 1, 128), lambda i: (i, 0, 0)),
        ),
        compiler_params=pltpu.CompilerParams(
            # Distinct output block per step -> no cross-step dependence, so the
            # grid can shard across both TensorCores on v7x.
            dimension_semantics=("parallel",),
            vmem_limit_bytes=int(vmem_limit)),
        cost_estimate=cost,
    )(xr, yr, wwt, wht)

    # F.l1_loss default reduction='mean' over the true (unpadded) elements.
    return jnp.sum(partials[:, 0, 0]) / jnp.float32(nc * h_out * w_out)


if __name__ == "__main__":
    key = jax.random.PRNGKey(0)
    kx, ky = jax.random.split(key)
    # x larger than y (widths 32 vs 16) -> x gets downscaled by 0.5.
    x = jax.random.uniform(kx, (2, 4, 32, 32), dtype=jnp.float32)
    y = jax.random.uniform(ky, (2, 4, 16, 16), dtype=jnp.float32)

    loss = bicubic_l1_loss(x, y)
    jax.block_until_ready(loss)

    # Pure-JAX reference using the same separable resize matrices.
    wh_ref = jnp.asarray(_bicubic_resize_matrix(32, 16, 0.5))
    ww_ref = jnp.asarray(_bicubic_resize_matrix(32, 16, 0.5))
    resized = jnp.einsum('oh,nchw,pw->ncop', wh_ref, x, ww_ref)
    ref = jnp.mean(jnp.abs(resized - y))
    np.testing.assert_allclose(float(loss), float(ref), rtol=2e-3, atol=2e-5)

    print("KERNEL_OK")
</pallas_src>

<mosaic_0001>
module attributes {stable_mosaic.version = 11 : i64} {
  func.func @_bicubic_l1_kernel(%arg0: i32, %arg1: memref<4x32x32xf32, #tpu.memory_space<vmem>>, %arg2: memref<4x16x16xf32, #tpu.memory_space<vmem>>, %arg3: memref<32x16xf32, #tpu.memory_space<vmem>>, %arg4: memref<32x16xf32, #tpu.memory_space<vmem>>, %arg5: memref<1x1x128xf32, #tpu.memory_space<vmem>>) attributes {dimension_semantics = [#tpu.dimension_semantics<parallel>], iteration_bounds = array<i64: 2>, scalar_prefetch = 0 : i64, scratch_operands = 0 : i64, tpu.core_type = #tpu.core_type<tc>, window_params = [{transform_indices = @transform_0, window_bounds = array<i64: 4, 32, 32>}, {transform_indices = @transform_1, window_bounds = array<i64: 4, 16, 16>}, {pipeline_mode = #tpu.pipeline_mode<synchronous>, transform_indices = @transform_2, window_bounds = array<i64: 32, 16>}, {pipeline_mode = #tpu.pipeline_mode<synchronous>, transform_indices = @transform_3, window_bounds = array<i64: 32, 16>}, {transform_indices = @transform_4, window_bounds = array<i64: 1, 1, 128>}]} {
    %c0 = arith.constant 0 : index
    %c0_0 = arith.constant 0 : index
    %c0_1 = arith.constant 0 : index
    %0 = vector.load %arg1[%c0, %c0_0, %c0_1] : memref<4x32x32xf32, #tpu.memory_space<vmem>>, vector<4x32x32xf32>
    %1 = vector.shape_cast %0 : vector<4x32x32xf32> to vector<128x32xf32>
    %c0_2 = arith.constant 0 : index
    %c0_3 = arith.constant 0 : index
    %2 = vector.load %arg3[%c0_2, %c0_3] : memref<32x16xf32, #tpu.memory_space<vmem>>, vector<32x16xf32>
    %cst = arith.constant dense<0.000000e+00> : vector<128x16xf32>
    %3 = tpu.matmul %1, %2, %cst {dimension_numbers = #tpu.dot_dimension_numbers<[1], [0], [0], [1], [0, 0, 1, 1], [], []>} : vector<128x32xf32>, vector<32x16xf32>, vector<128x16xf32> -> vector<128x16xf32>
    %4 = vector.shape_cast %3 : vector<128x16xf32> to vector<4x32x16xf32>
    %5 = tpu.transpose %4, [0, 2, 1] : vector<4x32x16xf32> -> vector<4x16x32xf32>
    %6 = vector.shape_cast %5 : vector<4x16x32xf32> to vector<64x32xf32>
    %c0_4 = arith.constant 0 : index
    %c0_5 = arith.constant 0 : index
    %7 = vector.load %arg4[%c0_4, %c0_5] : memref<32x16xf32, #tpu.memory_space<vmem>>, vector<32x16xf32>
    %cst_6 = arith.constant dense<0.000000e+00> : vector<64x16xf32>
    %8 = tpu.matmul %6, %7, %cst_6 {dimension_numbers = #tpu.dot_dimension_numbers<[1], [0], [0], [1], [0, 0, 1, 1], [], []>} : vector<64x32xf32>, vector<32x16xf32>, vector<64x16xf32> -> vector<64x16xf32>
    %9 = vector.shape_cast %8 : vector<64x16xf32> to vector<4x16x16xf32>
    %10 = tpu.transpose %9, [0, 2, 1] : vector<4x16x16xf32> -> vector<4x16x16xf32>
    %c0_7 = arith.constant 0 : index
    %c0_8 = arith.constant 0 : index
    %c0_9 = arith.constant 0 : index
    %11 = vector.load %arg2[%c0_7, %c0_8, %c0_9] : memref<4x16x16xf32, #tpu.memory_space<vmem>>, vector<4x16x16xf32>
    %12 = arith.subf %10, %11 : vector<4x16x16xf32>
    %13 = math.absf %12 : vector<4x16x16xf32>
    %14 = vector.shape_cast %13 : vector<4x16x16xf32> to vector<1x4x16x16xf32>
    %cst_10 = arith.constant dense<0.000000e+00> : vector<1xf32>
    %15 = vector.multi_reduction <add>, %14, %cst_10 [1, 2, 3] : vector<1x4x16x16xf32> to vector<1xf32>
    %16 = vector.shape_cast %15 : vector<1xf32> to vector<1x1x1x1xf32>
    %17 = vector.extract %16[0, 0, 0, 0] : f32 from vector<1x1x1x1xf32>
    %18 = vector.broadcast %17 : f32 to vector<1x1x1xf32>
    %19 = vector.shape_cast %18 : vector<1x1x1xf32> to vector<1x1x1xf32>
    %20 = vector.broadcast %19 : vector<1x1x1xf32> to vector<1x1x128xf32>
    %c0_11 = arith.constant 0 : index
    %c0_12 = arith.constant 0 : index
    %c0_13 = arith.constant 0 : index
    %21 = vector.load %arg5[%c0_11, %c0_12, %c0_13] : memref<1x1x128xf32, #tpu.memory_space<vmem>>, vector<1x1x128xf32>
    tpu.vector_store %arg5[%c0_11, %c0_12, %c0_13], %20 {strides = array<i32>} : memref<1x1x128xf32, #tpu.memory_space<vmem>>, vector<1x1x128xf32>,
    return
  }
  func.func @transform_0(%arg0: i32) -> (i32, i32, i32) {
    %c0_i32 = arith.constant 0 : i32
    %c0_i32_0 = arith.constant 0 : i32
    %c0_i32_1 = arith.constant 0 : i32
    return %arg0, %c0_i32, %c0_i32_0 : i32, i32, i32
  }
  func.func @transform_1(%arg0: i32) -> (i32, i32, i32) {
    %c0_i32 = arith.constant 0 : i32
    %c0_i32_0 = arith.constant 0 : i32
    %c0_i32_1 = arith.constant 0 : i32
    return %arg0, %c0_i32, %c0_i32_0 : i32, i32, i32
  }
  func.func @transform_2(%arg0: i32) -> (i32, i32) {
    %c0_i32 = arith.constant 0 : i32
    %c0_i32_0 = arith.constant 0 : i32
    %c0_i32_1 = arith.constant 0 : i32
    return %c0_i32, %c0_i32_0 : i32, i32
  }
  func.func @transform_3(%arg0: i32) -> (i32, i32) {
    %c0_i32 = arith.constant 0 : i32
    %c0_i32_0 = arith.constant 0 : i32
    %c0_i32_1 = arith.constant 0 : i32
    return %c0_i32, %c0_i32_0 : i32, i32
  }
  func.func @transform_4(%arg0: i32) -> (i32, i32, i32) {
    %c0_i32 = arith.constant 0 : i32
    %c0_i32_0 = arith.constant 0 : i32
    %c0_i32_1 = arith.constant 0 : i32
    return %arg0, %c0_i32, %c0_i32_0 : i32, i32, i32
  }
}

</mosaic_0001>

<llo_original>
// kernel: tpu_custom_call.1
$region0: #{tpu_custom_call.1}
  #allocation0 [shape = 'u32[]', space=smem, size = 0x4, offset = 0x4, fixed_abs, tag = 'smem constant byte address 0x4 - core index']
  #allocation1 [shape = 'u32[144,128]{1,0:T(1,128)}', space=vmem, size = 0x12000, scoped, tag = 'internal scratch']
  %s0 = inlined_call_operand.hbm [shape: f32[8,32,32], index: 0, kind: input, shape index: {}]
  %s1 = inlined_call_operand.hbm [shape: f32[8,16,16], index: 1, kind: input, shape index: {}]
  %s2 = inlined_call_operand.vmem [shape: f32[32,16], index: 2, kind: input, shape index: {}]
  %s3 = inlined_call_operand.vmem [shape: f32[32,16], index: 3, kind: input, shape index: {}]
  %s4 = inlined_call_operand.hbm [shape: f32[2,1,128], index: 4, kind: output, shape index: {}]
  %s5 = sld [smem:[#allocation0]]
  $region57: #{tpu_custom_call.1} parent=0
    _
  %s7 = ssub.s32 1, %s5
  %s8 = scalar_select 0, %s7, %s5
  $region1: #{tpu_custom_call.1} parent=0
    #allocation2 [shape = 'u8[131072]{0}', space=vmem, size = 0x20000, scoped, tag = 'input window, operand 0']
    #allocation3 [shape = 's32[2]{0}', space=sflag, size = 0x8, scoped, tag = 'scoped memory for tpu_custom_call.1']
    #allocation4 [shape = 's32[2]{0}', space=sflag, size = 0x8, scoped, tag = 'scoped memory for tpu_custom_call.1']
    #allocation5 [shape = 'u8[65536]{0}', space=vmem, size = 0x10000, scoped, tag = 'input window, operand 1']
    #allocation6 [shape = 's32[2]{0}', space=sflag, size = 0x8, scoped, tag = 'scoped memory for tpu_custom_call.1']
    #allocation7 [shape = 'u8[1024]{0}', space=vmem, size = 0x400, scoped, tag = 'output window, operand 0']
    %9 = vsyncpa [#allocation3], 0
    %s10 = scalar_lea.sflag [#allocation3], 1
    %11 = vsyncpa %s10, 0
    %12 = vsyncpa [#allocation6], 0
    %s13 = scalar_lea.sflag [#allocation6], 1
    %14 = vsyncpa %s13, 0
    %15 = vsyncpa [#allocation4], 0
    %s16 = scalar_lea.sflag [#allocation4], 1
    %17 = vsyncpa %s16, 0
    loop: start=0, step=1, limit=4
    $region2: #{tpu_custom_call.1} parent=1 // loop_pre_header
      _
    $region3: #{tpu_custom_call.1} parent=1 // loop_header
      %s19 = sphi 0, %s23
      %p20 = scmp.ge.s32.totalorder %s19, 4
      %s29 = sphi 0, %s31
      %s32 = sphi 0, %s29
      %s33 = sphi 0, %s32
      %s49 = sphi 0, %s33
      %s55 = sphi 0, %s57
      %s58 = sphi 0, %s55
      %s59 = sphi 0, %s58
      %s75 = sphi 0, %s59
      %s79 = sphi 0, %s79
      %s81 = sphi 0, %s79
      %s82 = sphi 0, %s81
      %s96 = sphi 0, %s82
      %s100 = sphi 0, %s100
      %s102 = sphi 0, %s100
      %s103 = sphi 0, %s102
      %s117 = sphi 0, %s103
      %s123 = sphi 0, %s125
      %s126 = sphi 0, %s123
      %s127 = sphi 0, %s126
      %s143 = sphi 0, %s127
    $region4: #{tpu_custom_call.1} parent=1 // loop_header_branch
      %22 = sbr.rel (%p20) target = $region8
    $region5: #{tpu_custom_call.1} parent=1 // loop_body
      %s24 = ssub.s32 %s19, 1
      %s25 = ssub.s32 %s19, 2
      %s26 = sadd.s32 %s19, 1
      %s27 = ssub.s32 %s19, %s26
      %p28 = scmp.eq.s32.totalorder %s27, 0
      %s30 = sadd.s32 %s29, 1
      %s31 = scalar_select %p28, %s29, %s30
      %p34 = pneg %p28
      %p35 = scmp.eq.s32.totalorder %s19, 1
      %p36 = por %p34, %p35
      %p37 = scmp.ne.s32.totalorder %s29, %s32
      %p38 = scmp.eq.s32.totalorder %s19, 0
      %p39 = por %p37, %p38
      %p40 = scmp.ne.s32.totalorder %s29, %s32
      %p41 = scmp.eq.s32.totalorder %s24, 1
      %p42 = por %p40, %p41
      %p43 = scmp.ne.s32.totalorder %s32, %s33
      %p44 = scmp.eq.s32.totalorder %s24, 0
      %p45 = por %p43, %p44
      %p46 = scmp.ne.s32.totalorder %s32, %s33
      %p47 = scmp.eq.s32.totalorder %s25, 1
      %p48 = por %p46, %p47
      %p50 = scmp.ne.s32.totalorder %s33, %s49
      %p51 = scmp.eq.s32.totalorder %s25, 0
      %p52 = por %p50, %p51
      %s53 = ssub.s32 %s19, %s26
      %p54 = scmp.eq.s32.totalorder %s53, 0
      %s56 = sadd.s32 %s55, 1
      %s57 = scalar_select %p54, %s55, %s56
      %p60 = pneg %p54
      %p61 = scmp.eq.s32.totalorder %s19, 1
      %p62 = por %p60, %p61
      %p63 = scmp.ne.s32.totalorder %s55, %s58
      %p64 = scmp.eq.s32.totalorder %s19, 0
      %p65 = por %p63, %p64
      %p66 = scmp.ne.s32.totalorder %s55, %s58
      %p67 = scmp.eq.s32.totalorder %s24, 1
      %p68 = por %p66, %p67
      %p69 = scmp.ne.s32.totalorder %s58, %s59
      %p70 = scmp.eq.s32.totalorder %s24, 0
      %p71 = por %p69, %p70
      %p72 = scmp.ne.s32.totalorder %s58, %s59
      %p73 = scmp.eq.s32.totalorder %s25, 1
      %p74 = por %p72, %p73
      %p76 = scmp.ne.s32.totalorder %s59, %s75
      %p77 = scmp.eq.s32.totalorder %s25, 0
      %p78 = por %p76, %p77
      %s80 = sadd.s32 %s79, 1
      %p83 = scmp.eq.s32.totalorder %s19, 1
      %p84 = scmp.ne.s32.totalorder %s79, %s81
      %p85 = scmp.eq.s32.totalorder %s19, 0
      %p86 = por %p84, %p85
      %p87 = scmp.ne.s32.totalorder %s79, %s81
      %p88 = scmp.eq.s32.totalorder %s24, 1
      %p89 = por %p87, %p88
      %p90 = scmp.ne.s32.totalorder %s81, %s82
      %p91 = scmp.eq.s32.totalorder %s24, 0
      %p92 = por %p90, %p91
      %p93 = scmp.ne.s32.totalorder %s81, %s82
      %p94 = scmp.eq.s32.totalorder %s25, 1
      %p95 = por %p93, %p94
      %p97 = scmp.ne.s32.totalorder %s82, %s96
      %p98 = scmp.eq.s32.totalorder %s25, 0
      %p99 = por %p97, %p98
      %s101 = sadd.s32 %s100, 1
      %p104 = scmp.eq.s32.totalorder %s19, 1
      %p105 = scmp.ne.s32.totalorder %s100, %s102
      %p106 = scmp.eq.s32.totalorder %s19, 0
      %p107 = por %p105, %p106
      %p108 = scmp.ne.s32.totalorder %s100, %s102
      %p109 = scmp.eq.s32.totalorder %s24, 1
      %p110 = por %p108, %p109
      %p111 = scmp.ne.s32.totalorder %s102, %s103
      %p112 = scmp.eq.s32.totalorder %s24, 0
      %p113 = por %p111, %p112
      %p114 = scmp.ne.s32.totalorder %s102, %s103
      %p115 = scmp.eq.s32.totalorder %s25, 1
      %p116 = por %p114, %p115
      %p118 = scmp.ne.s32.totalorder %s103, %s117
      %p119 = scmp.eq.s32.totalorder %s25, 0
      %p120 = por %p118, %p119
      %s121 = ssub.s32 %s19, %s26
      %p122 = scmp.eq.s32.totalorder %s121, 0
      %s124 = sadd.s32 %s123, 1
      %s125 = scalar_select %p122, %s123, %s124
      %p128 = pneg %p122
      %p129 = scmp.eq.s32.totalorder %s19, 1
      %p130 = por %p128, %p129
      %p131 = scmp.ne.s32.totalorder %s123, %s126
      %p132 = scmp.eq.s32.totalorder %s19, 0
      %p133 = por %p131, %p132
      %p134 = scmp.ne.s32.totalorder %s123, %s126
      %p135 = scmp.eq.s32.totalorder %s24, 1
      %p136 = por %p134, %p135
      %p137 = scmp.ne.s32.totalorder %s126, %s127
      %p138 = scmp.eq.s32.totalorder %s24, 0
      %p139 = por %p137, %p138
      %p140 = scmp.ne.s32.totalorder %s126, %s127
      %p141 = scmp.eq.s32.totalorder %s25, 1
      %p142 = por %p140, %p141
      %p144 = scmp.ne.s32.totalorder %s127, %s143
      %p145 = scmp.eq.s32.totalorder %s25, 0
      %p146 = por %p144, %p145
      %p147 = scmp.le.s32.totalorder 1, %s19
      %p148 = scmp.lt.s32.totalorder %s19, 3
      %p149 = pnand %p147, %p148
      %p150 = pneg %p149
      // Predicated region
      $region9: #{tpu_custom_call.1} parent=5 // pred_check
        _
      $region10: #{tpu_custom_call.1} parent=5 // pred_check_branch
        %152 = sbr.rel (%p149) target = $region12
      $region11: #{tpu_custom_call.1} parent=5 // pred_region
        %s153 = ssub.s32 %s19, 1
        // Predicated region
        $region13: #{tpu_custom_call.1} parent=11 // pred_check
          %p154 = pneg %p92
        $region14: #{tpu_custom_call.1} parent=11 // pred_check_branch
          %156 = sbr.rel (%p154) target = $region16
        $region15: #{tpu_custom_call.1} parent=11 // pred_region
          _
        $region16: #{tpu_custom_call.1} parent=11 // pred_fallthru
          _
        // Predicated region
        $region17: #{tpu_custom_call.1} parent=11 // pred_check
          %p157 = pneg %p113
        $region18: #{tpu_custom_call.1} parent=11 // pred_check_branch
          %159 = sbr.rel (%p157) target = $region20
        $region19: #{tpu_custom_call.1} parent=11 // pred_region
          _
        $region20: #{tpu_custom_call.1} parent=11 // pred_fallthru
          _
      $region12: #{tpu_custom_call.1} parent=5 // pred_fallthru
        _
      %p160 = scmp.lt.s32.totalorder %s19, 2
      // Predicated region
      $region21: #{tpu_custom_call.1} parent=5 // pred_check
        %p161 = pneg %p160
      $region22: #{tpu_custom_call.1} parent=5 // pred_check_branch
        %163 = sbr.rel (%p161) target = $region24
      $region23: #{tpu_custom_call.1} parent=5 // pred_region
        // Predicated region
        $region25: #{tpu_custom_call.1} parent=23 // pred_check
          %p164 = pneg %p39
        $region26: #{tpu_custom_call.1} parent=23 // pred_check_branch
          %166 = sbr.rel (%p164) target = $region28
        $region27: #{tpu_custom_call.1} parent=23 // pred_region
          %s167 = sand.u32 %s29, 1
          %s168 = scalar_lea.sflag [#allocation3], %s167
          %s169 = sand.u32 %s29, 1
          %s170 = smul.addr %s169, 128
          %s171 = scalar_lea.vmem [#allocation2], %s170
          %s172 = smul.u32 4, %s19
          %s174 = ssub.s32 2048, 2048
          %175 = vsyncadd %s168, %s174
          %s176 = smul.addr %s172, 4
          %s177 = smul.addr %s176, 128
          %s178 = scalar_lea.hbm %s0, %s177
          %s179 = sshll.u32 %s171, 4
          %s180 = int_to_ptr.vmem [resolvable:$true] %s179
          %185 = dma.hbm_to_vmem [thread:$0]  %s178, 2048, %s180, %s168, 128, 128, 8
        $region28: #{tpu_custom_call.1} parent=23 // pred_fallthru
          _
        // Predicated region
        $region29: #{tpu_custom_call.1} parent=23 // pred_check
          %p186 = pneg %p65
        $region30: #{tpu_custom_call.1} parent=23 // pred_check_branch
          %188 = sbr.rel (%p186) target = $region32
        $region31: #{tpu_custom_call.1} parent=23 // pred_region
          %s189 = sand.u32 %s55, 1
          %s190 = scalar_lea.sflag [#allocation6], %s189
          %s191 = sand.u32 %s55, 1
          %s192 = smul.addr %s191, 64
          %s193 = scalar_lea.vmem [#allocation5], %s192
          %s194 = smul.u32 4, %s19
          %s196 = ssub.s32 1024, 1024
          %197 = vsyncadd %s190, %s196
          %s198 = smul.addr %s194, 2
          %s199 = smul.addr %s198, 128
          %s200 = scalar_lea.hbm %s1, %s199
          %s201 = sshll.u32 %s193, 4
          %s202 = int_to_ptr.vmem [resolvable:$true] %s201
          %207 = dma.hbm_to_vmem [thread:$0]  %s200, 1024, %s202, %s190, 128, 128, 8
        $region32: #{tpu_custom_call.1} parent=23 // pred_fallthru
          _
      $region24: #{tpu_custom_call.1} parent=5 // pred_fallthru
        _
      %p208 = scmp.le.s32.totalorder 1, %s19
      %p209 = scmp.lt.s32.totalorder %s19, 3
      %p210 = pnand %p208, %p209
      %p211 = pneg %p210
      // Predicated region
      $region33: #{tpu_custom_call.1} parent=5 // pred_check
        _
      $region34: #{tpu_custom_call.1} parent=5 // pred_check_branch
        %213 = sbr.rel (%p210) target = $region36
      $region35: #{tpu_custom_call.1} parent=5 // pred_region
        %s214 = ssub.s32 %s19, 1
        %s215 = sand.u32 %s32, 1
        %s216 = scalar_lea.sflag [#allocation3], %s215
        %s217 = sand.u32 %s32, 1
        %s218 = smul.addr %s217, 128
        %s219 = scalar_lea.vmem [#allocation2], %s218
        // Predicated region
        $region37: #{tpu_custom_call.1} parent=35 // pred_check
          %p220 = pneg %p45
        $region38: #{tpu_custom_call.1} parent=35 // pred_check_branch
          %222 = sbr.rel (%p220) target = $region40
        $region39: #{tpu_custom_call.1} parent=35 // pred_region
          %223 = dma.done %s216, 2048
        $region40: #{tpu_custom_call.1} parent=35 // pred_fallthru
          _
        %s224 = sand.u32 %s58, 1
        %s225 = scalar_lea.sflag [#allocation6], %s224
        %s226 = sand.u32 %s58, 1
        %s227 = smul.addr %s226, 64
        %s228 = scalar_lea.vmem [#allocation5], %s227
        // Predicated region
        $region41: #{tpu_custom_call.1} parent=35 // pred_check
          %p229 = pneg %p71
        $region42: #{tpu_custom_call.1} parent=35 // pred_check_branch
          %231 = sbr.rel (%p229) target = $region44
        $region43: #{tpu_custom_call.1} parent=35 // pred_region
          %232 = dma.done %s225, 1024
        $region44: #{tpu_custom_call.1} parent=35 // pred_fallthru
          _
        %s233 = sand.u32 %s32, 1
        %s234 = scalar_lea.sflag [#allocation3], %s233
        %s235 = sand.u32 %s32, 1
        %s236 = smul.addr %s235, 128
        %s237 = scalar_lea.vmem [#allocation2], %s236
        %p238 = pneg %p45
        %p239 = pneg %p42
        %s240 = sand.u32 %s58, 1
        %s241 = scalar_lea.sflag [#allocation6], %s240
        %s242 = sand.u32 %s58, 1
        %s243 = smul.addr %s242, 64
        %s244 = scalar_lea.vmem [#allocation5], %s243
        %p245 = pneg %p71
        %p246 = pneg %p68
        %p247 = pneg %p92
        %p248 = pneg %p89
        %p249 = pneg %p113
        %p250 = pneg %p110
        %p251 = pneg %p139
        %p252 = pneg %p136
        %s253 = sand.u32 %s126, 1
        %s254 = scalar_lea.sflag [#allocation4], %s253
        %s255 = sand.u32 %s126, 1
        %s256 = scalar_lea.vmem [#allocation7], %s255
        %s257 = smul.u32 4, %s24
        %s258 = smul.u32 4, %s24
        %v259 = vld [vmem:[%s219] sm:$0xff]
        %v260 = vld [vmem:[%s219 + $0x8] sm:$0xff]
        %v261 = vld [vmem:[%s219 + $0x10] sm:$0xff]
        %v262 = vld [vmem:[%s219 + $0x18] sm:$0xff]
        %v263 = vld [vmem:[%s219 + $0x20] sm:$0xff]
        %v264 = vld [vmem:[%s219 + $0x28] sm:$0xff]
        %v265 = vld [vmem:[%s219 + $0x30] sm:$0xff]
        %v266 = vld [vmem:[%s219 + $0x38] sm:$0xff]
        %v267 = vld [vmem:[%s219 + $0x40] sm:$0xff]
        %v268 = vld [vmem:[%s219 + $0x48] sm:$0xff]
        %v269 = vld [vmem:[%s219 + $0x50] sm:$0xff]
        %v270 = vld [vmem:[%s219 + $0x58] sm:$0xff]
        %v271 = vld [vmem:[%s219 + $0x60] sm:$0xff]
        %v272 = vld [vmem:[%s219 + $0x68] sm:$0xff]
        %v273 = vld [vmem:[%s219 + $0x70] sm:$0xff]
        %v274 = vld [vmem:[%s219 + $0x78] sm:$0xff]
        %v275 = vld [vmem:[%s2] sm:$0xff]
        %v276 = vld [vmem:[%s2 + $0x8] sm:$0xff]
        %v277 = vld [vmem:[%s2 + $0x10] sm:$0xff]
        %v278 = vld [vmem:[%s2 + $0x18] sm:$0xff]
        %vm279 = vcmask 261120
        %v281 = vsel %vm279, %v259, 0
        %v284 = vsel %vm279, %v260, 0
        %v287 = vsel %vm279, %v261, 0
        %v290 = vsel %vm279, %v262, 0
        %v293 = vsel %vm279, %v263, 0
        %v296 = vsel %vm279, %v264, 0
        %v299 = vsel %vm279, %v265, 0
        %v302 = vsel %vm279, %v266, 0
        %v305 = vsel %vm279, %v267, 0
        %v308 = vsel %vm279, %v268, 0
        %v311 = vsel %vm279, %v269, 0
        %v314 = vsel %vm279, %v270, 0
        %v317 = vsel %vm279, %v271, 0
        %v320 = vsel %vm279, %v272, 0
        %v323 = vsel %vm279, %v273, 0
        %v326 = vsel %vm279, %v274, 0
        %328 = vmatprep.subr.mxu0 0.0
        %329 = vmatpush1.msra.mxu0 %v275
        %330 = vmatprep.subr.mxu0 0.0
        %331 = vmatpush1.msra.mxu0 %v276
        %332 = vmatprep.subr.mxu0 0.0
        %333 = vmatpush1.msra.mxu0 %v277
        %334 = vmatprep.subr.mxu0 0.0
        %335 = vmatpush1.msra.mxu0 %v278
        %336 = vmatprep.subr.mxu0 0.0
        %337 = vmatpush1.msra.mxu0 0.0
        %338 = vmatprep.subr.mxu0 0.0
        %339 = vmatpush1.msra.mxu0 0.0
        %340 = vmatprep.subr.mxu0 0.0
        %341 = vmatpush1.msra.mxu0 0.0
        %342 = vmatprep.subr.mxu0 0.0
        %343 = vmatpush1.msra.mxu0 0.0
        %344 = vmatprep.subr.mxu0 0.0
        %345 = vmatpush1.msra.mxu0 0.0
        %346 = vmatprep.subr.mxu0 0.0
        %347 = vmatpush1.msra.mxu0 0.0
        %348 = vmatprep.subr.mxu0 0.0
        %349 = vmatpush1.msra.mxu0 0.0
        %350 = vmatprep.subr.mxu0 0.0
        %351 = vmatpush1.msra.mxu0 0.0
        %352 = vmatprep.subr.mxu0 0.0
        %353 = vmatpush1.msra.mxu0 0.0
        %354 = vmatprep.subr.mxu0 0.0
        %355 = vmatpush1.msra.mxu0 0.0
        %356 = vmatprep.subr.mxu0 0.0
        %357 = vmatpush1.msra.mxu0 0.0
        %358 = vmatprep.subr.mxu0 0.0
        %359 = vmatpush1.msra.mxu0 0.0
        %360 = vmatprep.subr.mxu0 0.0
        %361 = vmatpush1.msra.mxu0 0.0
        %362 = vmatprep.subr.mxu0 0.0
        %363 = vmatpush1.msra.mxu0 0.0
        %364 = vmatprep.subr.mxu0 0.0
        %365 = vmatpush1.msra.mxu0 0.0
        %366 = vmatprep.subr.mxu0 0.0
        %367 = vmatpush1.msra.mxu0 0.0
        %368 = vmatprep.subr.mxu0 0.0
        %369 = vmatpush1.msra.mxu0 0.0
        %370 = vmatprep.subr.mxu0 0.0
        %371 = vmatpush1.msra.mxu0 0.0
        %372 = vmatprep.subr.mxu0 0.0
        %373 = vmatpush1.msra.mxu0 0.0
        %374 = vmatprep.subr.mxu0 0.0
        %375 = vmatpush1.msra.mxu0 0.0
        %376 = vmatprep.subr.mxu0 0.0
        %377 = vmatpush1.msra.mxu0 0.0
        %378 = vmatprep.subr.mxu0 0.0
        %379 = vmatpush1.msra.mxu0 0.0
        %380 = vmatprep.subr.mxu0 0.0
        %381 = vmatpush1.msra.mxu0 0.0
        %382 = vmatprep.subr.mxu0 0.0
        %383 = vmatpush1.msra.mxu0 0.0
        %384 = vmatprep.subr.mxu0 0.0
        %385 = vmatpush1.msra.mxu0 0.0
        %386 = vmatprep.subr.mxu0 0.0
        %387 = vmatpush1.msra.mxu0 0.0
        %388 = vmatprep.subr.mxu0 0.0
        %389 = vmatpush1.msra.mxu0 0.0
        %390 = vmatprep.subr.mxu0 0.0
        %391 = vmatpush1.msra.mxu0 0.0
        %392 = vmatprep.mubr.f32.mxu0 0.0
        %393 = vmatmul.mubr.f32.gmra.mrb[0].mxu0 %v281
        %v394 = vpop.f32.mrb[0].mxu0
        %v395 = vadd.f32 0.0, %v394
        %v396 = vpop.f32.mrb[0].mxu0
        %397 = vmatprep.mubr.f32.mxu0 0.0
        %398 = vmatmul.mubr.f32.gmra.mrb[0].mxu0 %v284
        %v399 = vpop.f32.mrb[0].mxu0
        %v400 = vadd.f32 0.0, %v399
        %v401 = vpop.f32.mrb[0].mxu0
        %402 = vmatprep.mubr.f32.mxu0 0.0
        %403 = vmatmul.mubr.f32.gmra.mrb[0].mxu0 %v287
        %v404 = vpop.f32.mrb[0].mxu0
        %v405 = vadd.f32 0.0, %v404
        %v406 = vpop.f32.mrb[0].mxu0
        %407 = vmatprep.mubr.f32.mxu0 0.0
        %408 = vmatmul.mubr.f32.gmra.mrb[0].mxu0 %v290
        %v409 = vpop.f32.mrb[0].mxu0
        %v410 = vadd.f32 0.0, %v409
        %v411 = vpop.f32.mrb[0].mxu0
        %412 = vmatprep.mubr.f32.mxu0 0.0
        %413 = vmatmul.mubr.f32.gmra.mrb[0].mxu0 %v293
        %v414 = vpop.f32.mrb[0].mxu0
        %v415 = vadd.f32 0.0, %v414
        %v416 = vpop.f32.mrb[0].mxu0
        %417 = vmatprep.mubr.f32.mxu0 0.0
        %418 = vmatmul.mubr.f32.gmra.mrb[0].mxu0 %v296
        %v419 = vpop.f32.mrb[0].mxu0
        %v420 = vadd.f32 0.0, %v419
        %v421 = vpop.f32.mrb[0].mxu0
        %422 = vmatprep.mubr.f32.mxu0 0.0
        %423 = vmatmul.mubr.f32.gmra.mrb[0].mxu0 %v299
        %v424 = vpop.f32.mrb[0].mxu0
        %v425 = vadd.f32 0.0, %v424
        %v426 = vpop.f32.mrb[0].mxu0
        %427 = vmatprep.mubr.f32.mxu0 0.0
        %428 = vmatmul.mubr.f32.gmra.mrb[0].mxu0 %v302
        %v429 = vpop.f32.mrb[0].mxu0
        %v430 = vadd.f32 0.0, %v429
        %v431 = vpop.f32.mrb[0].mxu0
        %432 = vmatprep.mubr.f32.mxu0 0.0
        %433 = vmatmul.mubr.f32.gmra.mrb[0].mxu0 %v305
        %v434 = vpop.f32.mrb[0].mxu0
        %v435 = vadd.f32 0.0, %v434
        %v436 = vpop.f32.mrb[0].mxu0
        %437 = vmatprep.mubr.f32.mxu0 0.0
        %438 = vmatmul.mubr.f32.gmra.mrb[0].mxu0 %v308
        %v439 = vpop.f32.mrb[0].mxu0
        %v440 = vadd.f32 0.0, %v439
        %v441 = vpop.f32.mrb[0].mxu0
        %442 = vmatprep.mubr.f32.mxu0 0.0
        %443 = vmatmul.mubr.f32.gmra.mrb[0].mxu0 %v311
        %v444 = vpop.f32.mrb[0].mxu0
        %v445 = vadd.f32 0.0, %v444
        %v446 = vpop.f32.mrb[0].mxu0
        %447 = vmatprep.mubr.f32.mxu0 0.0
        %448 = vmatmul.mubr.f32.gmra.mrb[0].mxu0 %v314
        %v449 = vpop.f32.mrb[0].mxu0
        %v450 = vadd.f32 0.0, %v449
        %v451 = vpop.f32.mrb[0].mxu0
        %452 = vmatprep.mubr.f32.mxu0 0.0
        %453 = vmatmul.mubr.f32.gmra.mrb[0].mxu0 %v317
        %v454 = vpop.f32.mrb[0].mxu0
        %v455 = vadd.f32 0.0, %v454
        %v456 = vpop.f32.mrb[0].mxu0
        %457 = vmatprep.mubr.f32.mxu0 0.0
        %458 = vmatmul.mubr.f32.gmra.mrb[0].mxu0 %v320
        %v459 = vpop.f32.mrb[0].mxu0
        %v460 = vadd.f32 0.0, %v459
        %v461 = vpop.f32.mrb[0].mxu0
        %462 = vmatprep.mubr.f32.mxu0 0.0
        %463 = vmatmul.mubr.f32.gmra.mrb[0].mxu0 %v323
        %v464 = vpop.f32.mrb[0].mxu0
        %v465 = vadd.f32 0.0, %v464
        %v466 = vpop.f32.mrb[0].mxu0
        %467 = vmatprep.mubr.f32.mxu0 0.0
        %468 = vmatmul.mubr.f32.gmra.mrb[0].mxu0 %v326
        %v469 = vpop.f32.mrb[0].mxu0
        %v470 = vadd.f32 0.0, %v469
        %v471 = vpop.f32.mrb[0].mxu0
        %472 = vdwg.mxu0
        %473 = vxpose.xlu0.b32.start [1/16] %v395, 128
        %474 = vxpose.xlu0.b32.cont [2/16] %v400, 128
        %475 = vxpose.xlu0.b32.cont [3/16] %v405, 128
        %476 = vxpose.xlu0.b32.cont [4/16] %v410, 128
        %477 = vxpose.xlu0.b32.cont [5/16] 0.0, 128
        %478 = vxpose.xlu0.b32.cont [6/16] 0.0, 128
        %479 = vxpose.xlu0.b32.cont [7/16] 0.0, 128
        %480 = vxpose.xlu0.b32.cont [8/16] 0.0, 128
        %481 = vxpose.xlu0.b32.cont [9/16] 0.0, 128
        %482 = vxpose.xlu0.b32.cont [10/16] 0.0, 128
        %483 = vxpose.xlu0.b32.cont [11/16] 0.0, 128
        %484 = vxpose.xlu0.b32.cont [12/16] 0.0, 128
        %485 = vxpose.xlu0.b32.cont [13/16] 0.0, 128
        %486 = vxpose.xlu0.b32.cont [14/16] 0.0, 128
        %487 = vxpose.xlu0.b32.cont [15/16] 0.0, 128
        %488 = vxpose.xlu0.b32.end [16/16] 0.0, 128
        %v489 = vpop.trf.xlu0
        %v490 = vpop.trf.xlu0
        %v491 = vpop.trf.xlu0
        %v492 = vpop.trf.xlu0
        %v493 = vpop.trf.xlu0
        %v494 = vpop.trf.xlu0
        %v495 = vpop.trf.xlu0
        %v496 = vpop.trf.xlu0
        %v497 = vpop.trf.xlu0
        %v498 = vpop.trf.xlu0
        %v499 = vpop.trf.xlu0
        %v500 = vpop.trf.xlu0
        %v501 = vpop.trf.xlu0
        %v502 = vpop.trf.xlu0
        %v503 = vpop.trf.xlu0
        %v504 = vpop.trf.xlu0
        %505 = vxpose.xlu0.b32.start [1/16] %v415, 128
        %506 = vxpose.xlu0.b32.cont [2/16] %v420, 128
        %507 = vxpose.xlu0.b32.cont [3/16] %v425, 128
        %508 = vxpose.xlu0.b32.cont [4/16] %v430, 128
        %509 = vxpose.xlu0.b32.cont [5/16] 0.0, 128
        %510 = vxpose.xlu0.b32.cont [6/16] 0.0, 128
        %511 = vxpose.xlu0.b32.cont [7/16] 0.0, 128
        %512 = vxpose.xlu0.b32.cont [8/16] 0.0, 128
        %513 = vxpose.xlu0.b32.cont [9/16] 0.0, 128
        %514 = vxpose.xlu0.b32.cont [10/16] 0.0, 128
        %515 = vxpose.xlu0.b32.cont [11/16] 0.0, 128
        %516 = vxpose.xlu0.b32.cont [12/16] 0.0, 128
        %517 = vxpose.xlu0.b32.cont [13/16] 0.0, 128
        %518 = vxpose.xlu0.b32.cont [14/16] 0.0, 128
        %519 = vxpose.xlu0.b32.cont [15/16] 0.0, 128
        %520 = vxpose.xlu0.b32.end [16/16] 0.0, 128
        %v521 = vpop.trf.xlu0
        %v522 = vpop.trf.xlu0
        %v523 = vpop.trf.xlu0
        %v524 = vpop.trf.xlu0
        %v525 = vpop.trf.xlu0
        %v526 = vpop.trf.xlu0
        %v527 = vpop.trf.xlu0
        %v528 = vpop.trf.xlu0
        %v529 = vpop.trf.xlu0
        %v530 = vpop.trf.xlu0
        %v531 = vpop.trf.xlu0
        %v532 = vpop.trf.xlu0
        %v533 = vpop.trf.xlu0
        %v534 = vpop.trf.xlu0
        %v535 = vpop.trf.xlu0
        %v536 = vpop.trf.xlu0
        %537 = vxpose.xlu0.b32.start [1/16] %v435, 128
        %538 = vxpose.xlu0.b32.cont [2/16] %v440, 128
        %539 = vxpose.xlu0.b32.cont [3/16] %v445, 128
        %540 = vxpose.xlu0.b32.cont [4/16] %v450, 128
        %541 = vxpose.xlu0.b32.cont [5/16] 0.0, 128
        %542 = vxpose.xlu0.b32.cont [6/16] 0.0, 128
        %543 = vxpose.xlu0.b32.cont [7/16] 0.0, 128
        %544 = vxpose.xlu0.b32.cont [8/16] 0.0, 128
        %545 = vxpose.xlu0.b32.cont [9/16] 0.0, 128
        %546 = vxpose.xlu0.b32.cont [10/16] 0.0, 128
        %547 = vxpose.xlu0.b32.cont [11/16] 0.0, 128
        %548 = vxpose.xlu0.b32.cont [12/16] 0.0, 128
        %549 = vxpose.xlu0.b32.cont [13/16] 0.0, 128
        %550 = vxpose.xlu0.b32.cont [14/16] 0.0, 128
        %551 = vxpose.xlu0.b32.cont [15/16] 0.0, 128
        %552 = vxpose.xlu0.b32.end [16/16] 0.0, 128
        %v553 = vpop.trf.xlu0
        %v554 = vpop.trf.xlu0
        %v555 = vpop.trf.xlu0
        %v556 = vpop.trf.xlu0
        %v557 = vpop.trf.xlu0
        %v558 = vpop.trf.xlu0
        %v559 = vpop.trf.xlu0
        %v560 = vpop.trf.xlu0
        %v561 = vpop.trf.xlu0
        %v562 = vpop.trf.xlu0
        %v563 = vpop.trf.xlu0
        %v564 = vpop.trf.xlu0
        %v565 = vpop.trf.xlu0
        %v566 = vpop.trf.xlu0
        %v567 = vpop.trf.xlu0
        %v568 = vpop.trf.xlu0
        %569 = vxpose.xlu0.b32.start [1/16] %v455, 128
        %570 = vxpose.xlu0.b32.cont [2/16] %v460, 128
        %571 = vxpose.xlu0.b32.cont [3/16] %v465, 128
        %572 = vxpose.xlu0.b32.cont [4/16] %v470, 128
        %573 = vxpose.xlu0.b32.cont [5/16] 0.0, 128
        %574 = vxpose.xlu0.b32.cont [6/16] 0.0, 128
        %575 = vxpose.xlu0.b32.cont [7/16] 0.0, 128
        %576 = vxpose.xlu0.b32.cont [8/16] 0.0, 128
        %577 = vxpose.xlu0.b32.cont [9/16] 0.0, 128
        %578 = vxpose.xlu0.b32.cont [10/16] 0.0, 128
        %579 = vxpose.xlu0.b32.cont [11/16] 0.0, 128
        %580 = vxpose.xlu0.b32.cont [12/16] 0.0, 128
        %581 = vxpose.xlu0.b32.cont [13/16] 0.0, 128
        %582 = vxpose.xlu0.b32.cont [14/16] 0.0, 128
        %583 = vxpose.xlu0.b32.cont [15/16] 0.0, 128
        %584 = vxpose.xlu0.b32.end [16/16] 0.0, 128
        %v585 = vpop.trf.xlu0
        %v586 = vpop.trf.xlu0
        %v587 = vpop.trf.xlu0
        %v588 = vpop.trf.xlu0
        %v589 = vpop.trf.xlu0
        %v590 = vpop.trf.xlu0
        %v591 = vpop.trf.xlu0
        %v592 = vpop.trf.xlu0
        %v593 = vpop.trf.xlu0
        %v594 = vpop.trf.xlu0
        %v595 = vpop.trf.xlu0
        %v596 = vpop.trf.xlu0
        %v597 = vpop.trf.xlu0
        %v598 = vpop.trf.xlu0
        %v599 = vpop.trf.xlu0
        %v600 = vpop.trf.xlu0
        %v601 = vld [vmem:[%s3] sm:$0xff]
        %v602 = vld [vmem:[%s3 + $0x8] sm:$0xff]
        %v603 = vld [vmem:[%s3 + $0x10] sm:$0xff]
        %v604 = vld [vmem:[%s3 + $0x18] sm:$0xff]
        %v606 = vsel %vm279, %v489, 0
        %v609 = vsel %vm279, %v490, 0
        %v612 = vsel %vm279, %v521, 0
        %v615 = vsel %vm279, %v522, 0
        %v618 = vsel %vm279, %v553, 0
        %v621 = vsel %vm279, %v554, 0
        %v624 = vsel %vm279, %v585, 0
        %v627 = vsel %vm279, %v586, 0
        %629 = vmatprep.subr.mxu0 0.0
        %630 = vmatpush1.msra.mxu0 %v601
        %631 = vmatprep.subr.mxu0 0.0
        %632 = vmatpush1.msra.mxu0 %v602
        %633 = vmatprep.subr.mxu0 0.0
        %634 = vmatpush1.msra.mxu0 %v603
        %635 = vmatprep.subr.mxu0 0.0
        %636 = vmatpush1.msra.mxu0 %v604
        %637 = vmatprep.subr.mxu0 0.0
        %638 = vmatpush1.msra.mxu0 0.0
        %639 = vmatprep.subr.mxu0 0.0
        %640 = vmatpush1.msra.mxu0 0.0
        %641 = vmatprep.subr.mxu0 0.0
        %642 = vmatpush1.msra.mxu0 0.0
        %643 = vmatprep.subr.mxu0 0.0
        %644 = vmatpush1.msra.mxu0 0.0
        %645 = vmatprep.subr.mxu0 0.0
        %646 = vmatpush1.msra.mxu0 0.0
        %647 = vmatprep.subr.mxu0 0.0
        %648 = vmatpush1.msra.mxu0 0.0
        %649 = vmatprep.subr.mxu0 0.0
        %650 = vmatpush1.msra.mxu0 0.0
        %651 = vmatprep.subr.mxu0 0.0
        %652 = vmatpush1.msra.mxu0 0.0
        %653 = vmatprep.subr.mxu0 0.0
        %654 = vmatpush1.msra.mxu0 0.0
        %655 = vmatprep.subr.mxu0 0.0
        %656 = vmatpush1.msra.mxu0 0.0
        %657 = vmatprep.subr.mxu0 0.0
        %658 = vmatpush1.msra.mxu0 0.0
        %659 = vmatprep.subr.mxu0 0.0
        %660 = vmatpush1.msra.mxu0 0.0
        %661 = vmatprep.subr.mxu0 0.0
        %662 = vmatpush1.msra.mxu0 0.0
        %663 = vmatprep.subr.mxu0 0.0
        %664 = vmatpush1.msra.mxu0 0.0
        %665 = vmatprep.subr.mxu0 0.0
        %666 = vmatpush1.msra.mxu0 0.0
        %667 = vmatprep.subr.mxu0 0.0
        %668 = vmatpush1.msra.mxu0 0.0
        %669 = vmatprep.subr.mxu0 0.0
        %670 = vmatpush1.msra.mxu0 0.0
        %671 = vmatprep.subr.mxu0 0.0
        %672 = vmatpush1.msra.mxu0 0.0
        %673 = vmatprep.subr.mxu0 0.0
        %674 = vmatpush1.msra.mxu0 0.0
        %675 = vmatprep.subr.mxu0 0.0
        %676 = vmatpush1.msra.mxu0 0.0
        %677 = vmatprep.subr.mxu0 0.0
        %678 = vmatpush1.msra.mxu0 0.0
        %679 = vmatprep.subr.mxu0 0.0
        %680 = vmatpush1.msra.mxu0 0.0
        %681 = vmatprep.subr.mxu0 0.0
        %682 = vmatpush1.msra.mxu0 0.0
        %683 = vmatprep.subr.mxu0 0.0
        %684 = vmatpush1.msra.mxu0 0.0
        %685 = vmatprep.subr.mxu0 0.0
        %686 = vmatpush1.msra.mxu0 0.0
        %687 = vmatprep.subr.mxu0 0.0
        %688 = vmatpush1.msra.mxu0 0.0
        %689 = vmatprep.subr.mxu0 0.0
        %690 = vmatpush1.msra.mxu0 0.0
        %691 = vmatprep.subr.mxu0 0.0
        %692 = vmatpush1.msra.mxu0 0.0
        %693 = vmatprep.mubr.f32.mxu0 0.0
        %694 = vmatmul.mubr.f32.gmra.mrb[0].mxu0 %v606
        %v695 = vpop.f32.mrb[0].mxu0
        %v696 = vadd.f32 0.0, %v695
        %v697 = vpop.f32.mrb[0].mxu0
        %698 = vmatprep.mubr.f32.mxu0 0.0
        %699 = vmatmul.mubr.f32.gmra.mrb[0].mxu0 %v609
        %v700 = vpop.f32.mrb[0].mxu0
        %v701 = vadd.f32 0.0, %v700
        %v702 = vpop.f32.mrb[0].mxu0
        %703 = vmatprep.mubr.f32.mxu0 0.0
        %704 = vmatmul.mubr.f32.gmra.mrb[0].mxu0 %v612
        %v705 = vpop.f32.mrb[0].mxu0
        %v706 = vadd.f32 0.0, %v705
        %v707 = vpop.f32.mrb[0].mxu0
        %708 = vmatprep.mubr.f32.mxu0 0.0
        %709 = vmatmul.mubr.f32.gmra.mrb[0].mxu0 %v615
        %v710 = vpop.f32.mrb[0].mxu0
        %v711 = vadd.f32 0.0, %v710
        %v712 = vpop.f32.mrb[0].mxu0
        %713 = vmatprep.mubr.f32.mxu0 0.0
        %714 = vmatmul.mubr.f32.gmra.mrb[0].mxu0 %v618
        %v715 = vpop.f32.mrb[0].mxu0
        %v716 = vadd.f32 0.0, %v715
        %v717 = vpop.f32.mrb[0].mxu0
        %718 = vmatprep.mubr.f32.mxu0 0.0
        %719 = vmatmul.mubr.f32.gmra.mrb[0].mxu0 %v621
        %v720 = vpop.f32.mrb[0].mxu0
        %v721 = vadd.f32 0.0, %v720
        %v722 = vpop.f32.mrb[0].mxu0
        %723 = vmatprep.mubr.f32.mxu0 0.0
        %724 = vmatmul.mubr.f32.gmra.mrb[0].mxu0 %v624
        %v725 = vpop.f32.mrb[0].mxu0
        %v726 = vadd.f32 0.0, %v725
        %v727 = vpop.f32.mrb[0].mxu0
        %728 = vmatprep.mubr.f32.mxu0 0.0
        %729 = vmatmul.mubr.f32.gmra.mrb[0].mxu0 %v627
        %v730 = vpop.f32.mrb[0].mxu0
        %v731 = vadd.f32 0.0, %v730
        %v732 = vpop.f32.mrb[0].mxu0
        %733 = vdwg.mxu0
        %734 = vxpose.xlu0.b32.start [1/16] %v696, 128
        %735 = vxpose.xlu0.b32.cont [2/16] %v701, 128
        %736 = vxpose.xlu0.b32.cont [3/16] 0.0, 128
        %737 = vxpose.xlu0.b32.cont [4/16] 0.0, 128
        %738 = vxpose.xlu0.b32.cont [5/16] 0.0, 128
        %739 = vxpose.xlu0.b32.cont [6/16] 0.0, 128
        %740 = vxpose.xlu0.b32.cont [7/16] 0.0, 128
        %741 = vxpose.xlu0.b32.cont [8/16] 0.0, 128
        %742 = vxpose.xlu0.b32.cont [9/16] 0.0, 128
        %743 = vxpose.xlu0.b32.cont [10/16] 0.0, 128
        %744 = vxpose.xlu0.b32.cont [11/16] 0.0, 128
        %745 = vxpose.xlu0.b32.cont [12/16] 0.0, 128
        %746 = vxpose.xlu0.b32.cont [13/16] 0.0, 128
        %747 = vxpose.xlu0.b32.cont [14/16] 0.0, 128
        %748 = vxpose.xlu0.b32.cont [15/16] 0.0, 128
        %749 = vxpose.xlu0.b32.end [16/16] 0.0, 128
        %v750 = vpop.trf.xlu0
        %v751 = vpop.trf.xlu0
        %v752 = vpop.trf.xlu0
        %v753 = vpop.trf.xlu0
        %v754 = vpop.trf.xlu0
        %v755 = vpop.trf.xlu0
        %v756 = vpop.trf.xlu0
        %v757 = vpop.trf.xlu0
        %v758 = vpop.trf.xlu0
        %v759 = vpop.trf.xlu0
        %v760 = vpop.trf.xlu0
        %v761 = vpop.trf.xlu0
        %v762 = vpop.trf.xlu0
        %v763 = vpop.trf.xlu0
        %v764 = vpop.trf.xlu0
        %v765 = vpop.trf.xlu0
        %766 = vxpose.xlu0.b32.start [1/16] %v706, 128
        %767 = vxpose.xlu0.b32.cont [2/16] %v711, 128
        %768 = vxpose.xlu0.b32.cont [3/16] 0.0, 128
        %769 = vxpose.xlu0.b32.cont [4/16] 0.0, 128
        %770 = vxpose.xlu0.b32.cont [5/16] 0.0, 128
        %771 = vxpose.xlu0.b32.cont [6/16] 0.0, 128
        %772 = vxpose.xlu0.b32.cont [7/16] 0.0, 128
        %773 = vxpose.xlu0.b32.cont [8/16] 0.0, 128
        %774 = vxpose.xlu0.b32.cont [9/16] 0.0, 128
        %775 = vxpose.xlu0.b32.cont [10/16] 0.0, 128
        %776 = vxpose.xlu0.b32.cont [11/16] 0.0, 128
        %777 = vxpose.xlu0.b32.cont [12/16] 0.0, 128
        %778 = vxpose.xlu0.b32.cont [13/16] 0.0, 128
        %779 = vxpose.xlu0.b32.cont [14/16] 0.0, 128
        %780 = vxpose.xlu0.b32.cont [15/16] 0.0, 128
        %781 = vxpose.xlu0.b32.end [16/16] 0.0, 128
        %v782 = vpop.trf.xlu0
        %v783 = vpop.trf.xlu0
        %v784 = vpop.trf.xlu0
        %v785 = vpop.trf.xlu0
        %v786 = vpop.trf.xlu0
        %v787 = vpop.trf.xlu0
        %v788 = vpop.trf.xlu0
        %v789 = vpop.trf.xlu0
        %v790 = vpop.trf.xlu0
        %v791 = vpop.trf.xlu0
        %v792 = vpop.trf.xlu0
        %v793 = vpop.trf.xlu0
        %v794 = vpop.trf.xlu0
        %v795 = vpop.trf.xlu0
        %v796 = vpop.trf.xlu0
        %v797 = vpop.trf.xlu0
        %798 = vxpose.xlu0.b32.start [1/16] %v716, 128
        %799 = vxpose.xlu0.b32.cont [2/16] %v721, 128
        %800 = vxpose.xlu0.b32.cont [3/16] 0.0, 128
        %801 = vxpose.xlu0.b32.cont [4/16] 0.0, 128
        %802 = vxpose.xlu0.b32.cont [5/16] 0.0, 128
        %803 = vxpose.xlu0.b32.cont [6/16] 0.0, 128
        %804 = vxpose.xlu0.b32.cont [7/16] 0.0, 128
        %805 = vxpose.xlu0.b32.cont [8/16] 0.0, 128
        %806 = vxpose.xlu0.b32.cont [9/16] 0.0, 128
        %807 = vxpose.xlu0.b32.cont [10/16] 0.0, 128
        %808 = vxpose.xlu0.b32.cont [11/16] 0.0, 128
        %809 = vxpose.xlu0.b32.cont [12/16] 0.0, 128
        %810 = vxpose.xlu0.b32.cont [13/16] 0.0, 128
        %811 = vxpose.xlu0.b32.cont [14/16] 0.0, 128
        %812 = vxpose.xlu0.b32.cont [15/16] 0.0, 128
        %813 = vxpose.xlu0.b32.end [16/16] 0.0, 128
        %v814 = vpop.trf.xlu0
        %v815 = vpop.trf.xlu0
        %v816 = vpop.trf.xlu0
        %v817 = vpop.trf.xlu0
        %v818 = vpop.trf.xlu0
        %v819 = vpop.trf.xlu0
        %v820 = vpop.trf.xlu0
        %v821 = vpop.trf.xlu0
        %v822 = vpop.trf.xlu0
        %v823 = vpop.trf.xlu0
        %v824 = vpop.trf.xlu0
        %v825 = vpop.trf.xlu0
        %v826 = vpop.trf.xlu0
        %v827 = vpop.trf.xlu0
        %v828 = vpop.trf.xlu0
        %v829 = vpop.trf.xlu0
        %830 = vxpose.xlu0.b32.start [1/16] %v726, 128
        %831 = vxpose.xlu0.b32.cont [2/16] %v731, 128
        %832 = vxpose.xlu0.b32.cont [3/16] 0.0, 128
        %833 = vxpose.xlu0.b32.cont [4/16] 0.0, 128
        %834 = vxpose.xlu0.b32.cont [5/16] 0.0, 128
        %835 = vxpose.xlu0.b32.cont [6/16] 0.0, 128
        %836 = vxpose.xlu0.b32.cont [7/16] 0.0, 128
        %837 = vxpose.xlu0.b32.cont [8/16] 0.0, 128
        %838 = vxpose.xlu0.b32.cont [9/16] 0.0, 128
        %839 = vxpose.xlu0.b32.cont [10/16] 0.0, 128
        %840 = vxpose.xlu0.b32.cont [11/16] 0.0, 128
        %841 = vxpose.xlu0.b32.cont [12/16] 0.0, 128
        %842 = vxpose.xlu0.b32.cont [13/16] 0.0, 128
        %843 = vxpose.xlu0.b32.cont [14/16] 0.0, 128
        %844 = vxpose.xlu0.b32.cont [15/16] 0.0, 128
        %845 = vxpose.xlu0.b32.end [16/16] 0.0, 128
        %v846 = vpop.trf.xlu0
        %v847 = vpop.trf.xlu0
        %v848 = vpop.trf.xlu0
        %v849 = vpop.trf.xlu0
        %v850 = vpop.trf.xlu0
        %v851 = vpop.trf.xlu0
        %v852 = vpop.trf.xlu0
        %v853 = vpop.trf.xlu0
        %v854 = vpop.trf.xlu0
        %v855 = vpop.trf.xlu0
        %v856 = vpop.trf.xlu0
        %v857 = vpop.trf.xlu0
        %v858 = vpop.trf.xlu0
        %v859 = vpop.trf.xlu0
        %v860 = vpop.trf.xlu0
        %v861 = vpop.trf.xlu0
        %v862 = vld [vmem:[%s228] sm:$0xff]
        %v863 = vld [vmem:[%s228 + $0x8] sm:$0xff]
        %v864 = vld [vmem:[%s228 + $0x10] sm:$0xff]
        %v865 = vld [vmem:[%s228 + $0x18] sm:$0xff]
        %v866 = vld [vmem:[%s228 + $0x20] sm:$0xff]
        %v867 = vld [vmem:[%s228 + $0x28] sm:$0xff]
        %v868 = vld [vmem:[%s228 + $0x30] sm:$0xff]
        %v869 = vld [vmem:[%s228 + $0x38] sm:$0xff]
        %v870 = vsub.f32 %v750, %v862
        %v871 = vsub.f32 %v751, %v863
        %v872 = vsub.f32 %v782, %v864
        %v873 = vsub.f32 %v783, %v865
        %v874 = vsub.f32 %v814, %v866
        %v875 = vsub.f32 %v815, %v867
        %v876 = vsub.f32 %v846, %v868
        %v877 = vsub.f32 %v847, %v869
        %v878 = vand.u32 2147483647, %v870
        %v879 = vand.u32 2147483647, %v871
        %v880 = vand.u32 2147483647, %v872
        %v881 = vand.u32 2147483647, %v873
        %v882 = vand.u32 2147483647, %v874
        %v883 = vand.u32 2147483647, %v875
        %v884 = vand.u32 2147483647, %v876
        %v885 = vand.u32 2147483647, %v877
        %vm886 = vcmask 130048
        %v887 = vsel %vm886, %v878, 0.0
        %v888 = vsel %vm886, %v879, 0.0
        %v889 = vadd.f32 %v887, %v888
        %v890 = vsel %vm886, %v880, 0.0
        %v891 = vadd.f32 %v889, %v890
        %v892 = vsel %vm886, %v881, 0.0
        %v893 = vadd.f32 %v891, %v892
        %v894 = vsel %vm886, %v882, 0.0
        %v895 = vadd.f32 %v893, %v894
        %v896 = vsel %vm886, %v883, 0.0
        %v897 = vadd.f32 %v895, %v896
        %v898 = vsel %vm886, %v884, 0.0
        %v899 = vadd.f32 %v897, %v898
        %v900 = vsel %vm886, %v885, 0.0
        %v901 = vadd.f32 %v899, %v900
        %902 = vadd.xlane.f32.xlu0 %v901
        %v903 = vpop.xlane.xlu0 %902
        %v904 = vrot.slane %v903, 4
        %v905 = vadd.f32 %v903, %v904
        %v906 = vrot.slane %v905, 2
        %v907 = vadd.f32 %v905, %v906
        %v908 = vrot.slane %v907, 1
        %v909 = vadd.f32 %v907, %v908
        %s910 = vtos %v909
        %v911 = vstv %s910
        %912 = vst [vmem:[%s256] sm:$0x1] %v911
        %s913 = sand.u32 %s126, 1
        %s914 = scalar_lea.sflag [#allocation4], %s913
        %s915 = sand.u32 %s126, 1
        %s916 = scalar_lea.vmem [#allocation7], %s915
        // Predicated region
        $region45: #{tpu_custom_call.1} parent=35 // pred_check
          %p917 = pneg %p136
        $region46: #{tpu_custom_call.1} parent=35 // pred_check_branch
          %919 = sbr.rel (%p917) target = $region48
        $region47: #{tpu_custom_call.1} parent=35 // pred_region
          %s921 = ssub.s32 16, 16
          %922 = vsyncadd %s914, %s921
          %s923 = smul.addr %s24, 16
          %s924 = scalar_lea.hbm %s4, %s923
          %s926 = sshll.u32 %s916, 4
          %s927 = int_to_ptr.vmem [resolvable:$true] %s926
          %929 = dma.vmem_to_hbm [thread:$0]  %s927, 16, %s924, %s914
        $region48: #{tpu_custom_call.1} parent=35 // pred_fallthru
          _
      $region36: #{tpu_custom_call.1} parent=5 // pred_fallthru
        _
      %p930 = scmp.le.s32.totalorder 2, %s19
      // Predicated region
      $region49: #{tpu_custom_call.1} parent=5 // pred_check
        %p931 = pneg %p930
      $region50: #{tpu_custom_call.1} parent=5 // pred_check_branch
        %933 = sbr.rel (%p931) target = $region52
      $region51: #{tpu_custom_call.1} parent=5 // pred_region
        %s934 = ssub.s32 %s19, 2
        // Predicated region
        $region53: #{tpu_custom_call.1} parent=51 // pred_check
          %p935 = pneg %p142
        $region54: #{tpu_custom_call.1} parent=51 // pred_check_branch
          %937 = sbr.rel (%p935) target = $region56
        $region55: #{tpu_custom_call.1} parent=51 // pred_region
          %s938 = sand.u32 %s127, 1
          %s939 = scalar_lea.sflag [#allocation4], %s938
          %s940 = sand.u32 %s127, 1
          %s941 = scalar_lea.vmem [#allocation7], %s940
          %942 = dma.done %s939, 16
        $region56: #{tpu_custom_call.1} parent=51 // pred_fallthru
          _
      $region52: #{tpu_custom_call.1} parent=5 // pred_fallthru
        _
    $region6: #{tpu_custom_call.1} parent=1 // loop_footer
      %s23 = sadd.s32 1, %s19
    $region7: #{tpu_custom_call.1} parent=1 // loop_footer_branch
      %18 = sbr.rel target = $region3
    $region8: #{tpu_custom_call.1} parent=1 // loop_exit
      _
    %943 = vsyncpa [#allocation3], 1
    %s944 = scalar_lea.sflag [#allocation3], 1
    %945 = vsyncpa %s944, 1
    %946 = vsyncpa [#allocation6], 1
    %s947 = scalar_lea.sflag [#allocation6], 1
    %948 = vsyncpa %s947, 1
    %949 = vsyncpa [#allocation4], 1
    %s950 = scalar_lea.sflag [#allocation4], 1
    %951 = vsyncpa %s950, 1

</llo_original>
